<compile_context>
chip_gen: v7x
topology: tpu7x:2x2x1
jax: 0.10.0
libtpu: 0.0.40
codegen_flags: <defaults>
</compile_context>

<pallas_src>
import functools

import jax
import jax.numpy as jnp
from jax import lax
from jax.experimental import pallas as pl
from jax.experimental.pallas import tpu as pltpu


def _round_up(x: int, m: int) -> int:
    return ((x + m - 1) // m) * m


def sgl_dense_kernel(xpre_ref, xpost_ref, w_ref, out_ref, new_w_ref, *, scale):
    xpre = xpre_ref[...]    # (B, In)        resident across grid
    xpost = xpost_ref[...]  # (B, TILE_OUT)  current out-tile of post spikes
    w = w_ref[...]          # (TILE_OUT, In) current weight tile

    # Forward: out = x_pre @ W^T  — contract xpre dim 1 with w dim 1,
    # no transpose materialized.
    out_ref[...] = lax.dot_general(
        xpre, w,
        dimension_numbers=(((1,), (1,)), ((), ())),
        preferred_element_type=jnp.float32,
    ).astype(out_ref.dtype)

    # Plasticity: delta_w = (lr / B) * x_post^T @ x_pre
    # Scale the small (B, TILE_OUT) operand, then contract batch dims (dim 0).
    xpost_scaled = xpost * scale
    delta = lax.dot_general(
        xpost_scaled, xpre,
        dimension_numbers=(((0,), (0,)), ((), ())),
        preferred_element_type=jnp.float32,
    )
    new_w_ref[...] = (w + delta).astype(new_w_ref.dtype)


@functools.partial(jax.jit, static_argnames=("learning_rate",))
def sgl_dense_forward(x_pre, x_post, weight, *, learning_rate):
    """Returns (out, new_weight); caller carries new_weight forward (stateless JAX)."""
    B, in_features = x_pre.shape
    out_features = weight.shape[0]
    assert x_post.shape == (B, out_features)
    assert weight.shape == (out_features, in_features)

    # --- pad to lane/sublane-friendly shapes -------------------------------
    B_p = _round_up(B, 8)
    In_p = _round_up(in_features, 128)
    tile_out = min(256, _round_up(out_features, 128))
    Out_p = _round_up(out_features, tile_out)

    xpre_p = jnp.pad(x_pre.astype(jnp.float32),
                     ((0, B_p - B), (0, In_p - in_features)))
    xpost_p = jnp.pad(x_post.astype(jnp.float32),
                      ((0, B_p - B), (0, Out_p - out_features)))
    w_p = jnp.pad(weight.astype(jnp.float32),
                  ((0, Out_p - out_features), (0, In_p - in_features)))

    # mean is over the ORIGINAL batch size (zero-padded rows contribute 0).
    scale = float(learning_rate) / float(B)
    kernel = functools.partial(sgl_dense_kernel, scale=scale)

    n_tiles = Out_p // tile_out

    out_p, new_w_p = pl.pallas_call(
        kernel,
        out_shape=(
            jax.ShapeDtypeStruct((B_p, Out_p), jnp.float32),
            jax.ShapeDtypeStruct((Out_p, In_p), jnp.float32),
        ),
        grid=(n_tiles,),
        in_specs=[
            # x_pre: full-resident, reused by every out-tile.
            pl.BlockSpec((B_p, In_p), lambda i: (0, 0)),
            # x_post: (B, TILE_OUT) slice per grid step.
            pl.BlockSpec((B_p, tile_out), lambda i: (0, i)),
            # weight: (TILE_OUT, In) row-tile streamed through VMEM.
            pl.BlockSpec((tile_out, In_p), lambda i: (i, 0)),
        ],
        out_specs=(
            pl.BlockSpec((B_p, tile_out), lambda i: (0, i)),
            pl.BlockSpec((tile_out, In_p), lambda i: (i, 0)),
        ),
        # weight (input #2) aliases new_weight (output #1): in-place update,
        # halves weight HBM footprint. The padded weight buffer is freshly
        # created above, so donation is safe.
        input_output_aliases={2: 1},
        compiler_params=pltpu.CompilerParams(
            dimension_semantics=("parallel",),
            vmem_limit_bytes=48 * 1024 * 1024,  # > scoped default, < v7x physical
        ),
    )(xpre_p, xpost_p, w_p)

    # TODO(synk): for very large in_features, add an inner "arbitrary" In axis
    # with a VMEM accumulator for `out` instead of keeping x_pre full-resident.

    out = out_p[:B, :out_features]
    new_weight = new_w_p[:out_features, :in_features]
    return out, new_weight


if __name__ == "__main__":
    key = jax.random.PRNGKey(0)
    k_w, k_pre, k_post = jax.random.split(key, 3)

    # Small but lane/sublane-aligned demo shapes (wrapper also handles
    # unaligned shapes via zero padding).
    batch = 8
    in_features = 256
    out_features = 512          # -> 2 grid steps at TILE_OUT = 256
    learning_rate = 0.01        # SGLCfg default

    # torch.randn(out, in) * 0.1 analogue.
    weight = jax.random.normal(k_w, (out_features, in_features), jnp.float32) * 0.1

    # Spike-like 0/1 inputs, deterministic.
    x_pre = (jax.random.uniform(k_pre, (batch, in_features)) > 0.5).astype(jnp.float32)
    x_post = (jax.random.uniform(k_post, (batch, out_features)) > 0.5).astype(
        jnp.float32
    )

    out, new_weight = sgl_dense_forward(
        x_pre, x_post, weight, learning_rate=learning_rate
    )
    out = jax.block_until_ready(out)
    new_weight = jax.block_until_ready(new_weight)

    # Reference check in plain JAX (matches PyTorch semantics).
    out_ref = x_pre @ weight.T
    delta_ref = learning_rate * (x_post.T @ x_pre) / batch
    new_w_ref = weight + delta_ref
    assert jnp.allclose(out, out_ref, atol=1e-5, rtol=1e-5)
    assert jnp.allclose(new_weight, new_w_ref, atol=1e-5, rtol=1e-5)

    print("KERNEL_OK")
</pallas_src>

<mosaic_0001>
module attributes {stable_mosaic.version = 11 : i64} {
  func.func @sgl_dense_kernel(%arg0: i32, %arg1: memref<8x256xf32, #tpu.memory_space<vmem>>, %arg2: memref<8x256xf32, #tpu.memory_space<vmem>>, %arg3: memref<256x256xf32, #tpu.memory_space<vmem>>, %arg4: memref<8x256xf32, #tpu.memory_space<vmem>>, %arg5: memref<256x256xf32, #tpu.memory_space<vmem>>) attributes {dimension_semantics = [#tpu.dimension_semantics<parallel>], iteration_bounds = array<i64: 2>, scalar_prefetch = 0 : i64, scratch_operands = 0 : i64, tpu.core_type = #tpu.core_type<tc>, window_params = [{pipeline_mode = #tpu.pipeline_mode<synchronous>, transform_indices = @transform_0, window_bounds = array<i64: 8, 256>}, {transform_indices = @transform_1, window_bounds = array<i64: 8, 256>}, {transform_indices = @transform_2, window_bounds = array<i64: 256, 256>}, {transform_indices = @transform_3, window_bounds = array<i64: 8, 256>}, {transform_indices = @transform_4, window_bounds = array<i64: 256, 256>}]} {
    %c0 = arith.constant 0 : index
    %c0_0 = arith.constant 0 : index
    %0 = vector.load %arg1[%c0, %c0_0] : memref<8x256xf32, #tpu.memory_space<vmem>>, vector<8x256xf32>
    %c0_1 = arith.constant 0 : index
    %c0_2 = arith.constant 0 : index
    %1 = vector.load %arg2[%c0_1, %c0_2] : memref<8x256xf32, #tpu.memory_space<vmem>>, vector<8x256xf32>
    %c0_3 = arith.constant 0 : index
    %c0_4 = arith.constant 0 : index
    %2 = vector.load %arg3[%c0_3, %c0_4] : memref<256x256xf32, #tpu.memory_space<vmem>>, vector<256x256xf32>
    %cst = arith.constant dense<0.000000e+00> : vector<8x256xf32>
    %3 = tpu.matmul %0, %2, %cst {dimension_numbers = #tpu.dot_dimension_numbers<[1], [1], [0], [0], [0, 0, 1, 0], [], []>} : vector<8x256xf32>, vector<256x256xf32>, vector<8x256xf32> -> vector<8x256xf32>
    %c0_5 = arith.constant 0 : index
    %c0_6 = arith.constant 0 : index
    %4 = vector.load %arg4[%c0_5, %c0_6] : memref<8x256xf32, #tpu.memory_space<vmem>>, vector<8x256xf32>
    tpu.vector_store %arg4[%c0_5, %c0_6], %3 {strides = array<i32>} : memref<8x256xf32, #tpu.memory_space<vmem>>, vector<8x256xf32>,
    %cst_7 = arith.constant 1.250000e-03 : f32
    %5 = vector.broadcast %cst_7 : f32 to vector<8x256xf32>
    %6 = arith.mulf %1, %5 : vector<8x256xf32>
    %cst_8 = arith.constant dense<0.000000e+00> : vector<256x256xf32>
    %7 = tpu.matmul %6, %0, %cst_8 {dimension_numbers = #tpu.dot_dimension_numbers<[0], [0], [1], [1], [0, 1, 1, 1], [], []>} : vector<8x256xf32>, vector<8x256xf32>, vector<256x256xf32> -> vector<256x256xf32>
    %8 = arith.addf %2, %7 : vector<256x256xf32>
    %c0_9 = arith.constant 0 : index
    %c0_10 = arith.constant 0 : index
    %9 = vector.load %arg5[%c0_9, %c0_10] : memref<256x256xf32, #tpu.memory_space<vmem>>, vector<256x256xf32>
    tpu.vector_store %arg5[%c0_9, %c0_10], %8 {strides = array<i32>} : memref<256x256xf32, #tpu.memory_space<vmem>>, vector<256x256xf32>,
    return
  }
  func.func @transform_0(%arg0: i32) -> (i32, i32) {
    %c0_i32 = arith.constant 0 : i32
    %c0_i32_0 = arith.constant 0 : i32
    %c0_i32_1 = arith.constant 0 : i32
    return %c0_i32, %c0_i32_0 : i32, i32
  }
  func.func @transform_1(%arg0: i32) -> (i32, i32) {
    %c0_i32 = arith.constant 0 : i32
    %c0_i32_0 = arith.constant 0 : i32
    return %c0_i32, %arg0 : i32, i32
  }
  func.func @transform_2(%arg0: i32) -> (i32, i32) {
    %c0_i32 = arith.constant 0 : i32
    %c0_i32_0 = arith.constant 0 : i32
    return %arg0, %c0_i32 : i32, i32
  }
  func.func @transform_3(%arg0: i32) -> (i32, i32) {
    %c0_i32 = arith.constant 0 : i32
    %c0_i32_0 = arith.constant 0 : i32
    return %c0_i32, %arg0 : i32, i32
  }
  func.func @transform_4(%arg0: i32) -> (i32, i32) {
    %c0_i32 = arith.constant 0 : i32
    %c0_i32_0 = arith.constant 0 : i32
    return %arg0, %c0_i32 : i32, i32
  }
}

</mosaic_0001>

<llo_original>
// kernel: sgl_dense_forward.1
$region0: #{sgl_dense_forward.1}
  #allocation0 [shape = 'u32[]', space=smem, size = 0x4, offset = 0x4, fixed_abs, tag = 'smem constant byte address 0x4 - core index']
  #allocation1 [shape = 'u32[144,128]{1,0:T(1,128)}', space=vmem, size = 0x12000, scoped, tag = 'internal scratch']
  %s0 = inlined_call_operand.vmem [shape: f32[8,256], index: 0, kind: input, shape index: {}]
  %s1 = inlined_call_operand.vmem [shape: f32[8,512], index: 1, kind: input, shape index: {}]
  %s2 = inlined_call_operand.hbm [shape: f32[512,256], index: 2, kind: input, shape index: {}, may-alias: {2,4}]
  %s3 = inlined_call_operand.hbm [shape: f32[8,512], index: 3, kind: output, shape index: {0}]
  %s4 = inlined_call_operand.hbm [shape: f32[512,256], index: 4, kind: output, shape index: {1}, may-alias: {2,4}]
  %5 = xla_tuple %s3, %s4
  %s6 = sld [smem:[#allocation0]]
  $region57: #{sgl_dense_forward.1} parent=0
    _
  %s8 = ssub.s32 1, %s6
  %s9 = scalar_select 0, %s8, %s6
  $region1: #{sgl_dense_forward.1} parent=0
    #allocation2 [shape = 'u8[524288]{0}', space=vmem, size = 0x80000, scoped, tag = 'input window, operand 2']
    #allocation3 [shape = 's32[2]{0}', space=sflag, size = 0x8, scoped, tag = 'scoped memory for sgl_dense_forward.1']
    #allocation4 [shape = 's32[2]{0}', space=sflag, size = 0x8, scoped, tag = 'scoped memory for sgl_dense_forward.1']
    #allocation5 [shape = 'u8[16384]{0}', space=vmem, size = 0x4000, scoped, tag = 'output window, operand 0']
    #allocation6 [shape = 'u8[524288]{0}', space=vmem, size = 0x80000, scoped, tag = 'output window, operand 1']
    #allocation7 [shape = 's32[2]{0}', space=sflag, size = 0x8, scoped, tag = 'scoped memory for sgl_dense_forward.1']
    %10 = vsyncpa [#allocation3], 0
    %s11 = scalar_lea.sflag [#allocation3], 1
    %12 = vsyncpa %s11, 0
    %13 = vsyncpa [#allocation4], 0
    %s14 = scalar_lea.sflag [#allocation4], 1
    %15 = vsyncpa %s14, 0
    %16 = vsyncpa [#allocation7], 0
    %s17 = scalar_lea.sflag [#allocation7], 1
    %18 = vsyncpa %s17, 0
    loop: start=0, step=1, limit=4
    $region2: #{sgl_dense_forward.1} parent=1 // loop_pre_header
      _
    $region3: #{sgl_dense_forward.1} parent=1 // loop_header
      %s20 = sphi 0, %s24
      %p21 = scmp.ge.s32.totalorder %s20, 4
      %s28 = sphi 0, %s28
      %s30 = sphi 0, %s28
      %s31 = sphi 0, %s30
      %s45 = sphi 0, %s31
      %s51 = sphi 0, %s53
      %s54 = sphi 0, %s51
      %s55 = sphi 0, %s54
      %s71 = sphi 0, %s55
      %s77 = sphi 0, %s79
      %s80 = sphi 0, %s77
      %s81 = sphi 0, %s80
      %s97 = sphi 0, %s81
      %s103 = sphi 0, %s105
      %s106 = sphi 0, %s103
      %s107 = sphi 0, %s106
      %s123 = sphi 0, %s107
      %s129 = sphi 0, %s131
      %s132 = sphi 0, %s129
      %s133 = sphi 0, %s132
      %s149 = sphi 0, %s133
    $region4: #{sgl_dense_forward.1} parent=1 // loop_header_branch
      %23 = sbr.rel (%p21) target = $region8
    $region5: #{sgl_dense_forward.1} parent=1 // loop_body
      %s25 = ssub.s32 %s20, 1
      %s26 = ssub.s32 %s20, 2
      %s27 = sadd.s32 %s20, 1
      %s29 = sadd.s32 %s28, 1
      %p32 = scmp.eq.s32.totalorder %s20, 1
      %p33 = scmp.ne.s32.totalorder %s28, %s30
      %p34 = scmp.eq.s32.totalorder %s20, 0
      %p35 = por %p33, %p34
      %p36 = scmp.ne.s32.totalorder %s28, %s30
      %p37 = scmp.eq.s32.totalorder %s25, 1
      %p38 = por %p36, %p37
      %p39 = scmp.ne.s32.totalorder %s30, %s31
      %p40 = scmp.eq.s32.totalorder %s25, 0
      %p41 = por %p39, %p40
      %p42 = scmp.ne.s32.totalorder %s30, %s31
      %p43 = scmp.eq.s32.totalorder %s26, 1
      %p44 = por %p42, %p43
      %p46 = scmp.ne.s32.totalorder %s31, %s45
      %p47 = scmp.eq.s32.totalorder %s26, 0
      %p48 = por %p46, %p47
      %s49 = ssub.s32 %s20, %s27
      %p50 = scmp.eq.s32.totalorder %s49, 0
      %s52 = sadd.s32 %s51, 1
      %s53 = scalar_select %p50, %s51, %s52
      %p56 = pneg %p50
      %p57 = scmp.eq.s32.totalorder %s20, 1
      %p58 = por %p56, %p57
      %p59 = scmp.ne.s32.totalorder %s51, %s54
      %p60 = scmp.eq.s32.totalorder %s20, 0
      %p61 = por %p59, %p60
      %p62 = scmp.ne.s32.totalorder %s51, %s54
      %p63 = scmp.eq.s32.totalorder %s25, 1
      %p64 = por %p62, %p63
      %p65 = scmp.ne.s32.totalorder %s54, %s55
      %p66 = scmp.eq.s32.totalorder %s25, 0
      %p67 = por %p65, %p66
      %p68 = scmp.ne.s32.totalorder %s54, %s55
      %p69 = scmp.eq.s32.totalorder %s26, 1
      %p70 = por %p68, %p69
      %p72 = scmp.ne.s32.totalorder %s55, %s71
      %p73 = scmp.eq.s32.totalorder %s26, 0
      %p74 = por %p72, %p73
      %s75 = ssub.s32 %s20, %s27
      %p76 = scmp.eq.s32.totalorder %s75, 0
      %s78 = sadd.s32 %s77, 1
      %s79 = scalar_select %p76, %s77, %s78
      %p82 = pneg %p76
      %p83 = scmp.eq.s32.totalorder %s20, 1
      %p84 = por %p82, %p83
      %p85 = scmp.ne.s32.totalorder %s77, %s80
      %p86 = scmp.eq.s32.totalorder %s20, 0
      %p87 = por %p85, %p86
      %p88 = scmp.ne.s32.totalorder %s77, %s80
      %p89 = scmp.eq.s32.totalorder %s25, 1
      %p90 = por %p88, %p89
      %p91 = scmp.ne.s32.totalorder %s80, %s81
      %p92 = scmp.eq.s32.totalorder %s25, 0
      %p93 = por %p91, %p92
      %p94 = scmp.ne.s32.totalorder %s80, %s81
      %p95 = scmp.eq.s32.totalorder %s26, 1
      %p96 = por %p94, %p95
      %p98 = scmp.ne.s32.totalorder %s81, %s97
      %p99 = scmp.eq.s32.totalorder %s26, 0
      %p100 = por %p98, %p99
      %s101 = ssub.s32 %s20, %s27
      %p102 = scmp.eq.s32.totalorder %s101, 0
      %s104 = sadd.s32 %s103, 1
      %s105 = scalar_select %p102, %s103, %s104
      %p108 = pneg %p102
      %p109 = scmp.eq.s32.totalorder %s20, 1
      %p110 = por %p108, %p109
      %p111 = scmp.ne.s32.totalorder %s103, %s106
      %p112 = scmp.eq.s32.totalorder %s20, 0
      %p113 = por %p111, %p112
      %p114 = scmp.ne.s32.totalorder %s103, %s106
      %p115 = scmp.eq.s32.totalorder %s25, 1
      %p116 = por %p114, %p115
      %p117 = scmp.ne.s32.totalorder %s106, %s107
      %p118 = scmp.eq.s32.totalorder %s25, 0
      %p119 = por %p117, %p118
      %p120 = scmp.ne.s32.totalorder %s106, %s107
      %p121 = scmp.eq.s32.totalorder %s26, 1
      %p122 = por %p120, %p121
      %p124 = scmp.ne.s32.totalorder %s107, %s123
      %p125 = scmp.eq.s32.totalorder %s26, 0
      %p126 = por %p124, %p125
      %s127 = ssub.s32 %s20, %s27
      %p128 = scmp.eq.s32.totalorder %s127, 0
      %s130 = sadd.s32 %s129, 1
      %s131 = scalar_select %p128, %s129, %s130
      %p134 = pneg %p128
      %p135 = scmp.eq.s32.totalorder %s20, 1
      %p136 = por %p134, %p135
      %p137 = scmp.ne.s32.totalorder %s129, %s132
      %p138 = scmp.eq.s32.totalorder %s20, 0
      %p139 = por %p137, %p138
      %p140 = scmp.ne.s32.totalorder %s129, %s132
      %p141 = scmp.eq.s32.totalorder %s25, 1
      %p142 = por %p140, %p141
      %p143 = scmp.ne.s32.totalorder %s132, %s133
      %p144 = scmp.eq.s32.totalorder %s25, 0
      %p145 = por %p143, %p144
      %p146 = scmp.ne.s32.totalorder %s132, %s133
      %p147 = scmp.eq.s32.totalorder %s26, 1
      %p148 = por %p146, %p147
      %p150 = scmp.ne.s32.totalorder %s133, %s149
      %p151 = scmp.eq.s32.totalorder %s26, 0
      %p152 = por %p150, %p151
      %p153 = scmp.le.s32.totalorder 1, %s20
      %p154 = scmp.lt.s32.totalorder %s20, 3
      %p155 = pnand %p153, %p154
      %p156 = pneg %p155
      // Predicated region
      $region9: #{sgl_dense_forward.1} parent=5 // pred_check
        _
      $region10: #{sgl_dense_forward.1} parent=5 // pred_check_branch
        %158 = sbr.rel (%p155) target = $region12
      $region11: #{sgl_dense_forward.1} parent=5 // pred_region
        %s159 = ssub.s32 %s20, 1
        // Predicated region
        $region13: #{sgl_dense_forward.1} parent=11 // pred_check
          %p160 = pneg %p41
        $region14: #{sgl_dense_forward.1} parent=11 // pred_check_branch
          %162 = sbr.rel (%p160) target = $region16
        $region15: #{sgl_dense_forward.1} parent=11 // pred_region
          _
        $region16: #{sgl_dense_forward.1} parent=11 // pred_fallthru
          _
      $region12: #{sgl_dense_forward.1} parent=5 // pred_fallthru
        _
      %p163 = scmp.lt.s32.totalorder %s20, 2
      // Predicated region
      $region17: #{sgl_dense_forward.1} parent=5 // pred_check
        %p164 = pneg %p163
      $region18: #{sgl_dense_forward.1} parent=5 // pred_check_branch
        %166 = sbr.rel (%p164) target = $region20
      $region19: #{sgl_dense_forward.1} parent=5 // pred_region
        // Predicated region
        $region21: #{sgl_dense_forward.1} parent=19 // pred_check
          %p167 = pneg %p61
        $region22: #{sgl_dense_forward.1} parent=19 // pred_check_branch
          %169 = sbr.rel (%p167) target = $region24
        $region23: #{sgl_dense_forward.1} parent=19 // pred_region
          %s170 = smul.u32 2, %s20
          %p171 = scmp.lt.s32.totalorder %s170, 3
          %s172 = scalar_select %p171, %s170, 3
          %s173 = smul.addr %s172, 8
          %s174 = scalar_lea.vmem %s1, %s173
          %s175 = smul.u32 2, %s20
        $region24: #{sgl_dense_forward.1} parent=19 // pred_fallthru
          _
        // Predicated region
        $region25: #{sgl_dense_forward.1} parent=19 // pred_check
          %p176 = pneg %p87
        $region26: #{sgl_dense_forward.1} parent=19 // pred_check_branch
          %178 = sbr.rel (%p176) target = $region28
        $region27: #{sgl_dense_forward.1} parent=19 // pred_region
          %s179 = sand.u32 %s77, 1
          %s180 = scalar_lea.sflag [#allocation3], %s179
          %s181 = sand.u32 %s77, 1
          %s182 = smul.addr %s181, 512
          %s183 = scalar_lea.vmem [#allocation2], %s182
          %s184 = smul.u32 32, %s20
          %s186 = ssub.s32 8192, 8192
          %187 = vsyncadd %s180, %s186
          %s188 = smul.addr %s184, 2
          %s189 = smul.addr %s188, 128
          %s190 = scalar_lea.hbm %s2, %s189
          %s191 = sshll.u32 %s183, 4
          %s192 = int_to_ptr.vmem [resolvable:$true] %s191
          %197 = dma.hbm_to_vmem [thread:$0]  %s190, 8192, %s192, %s180, 256, 256, 16
        $region28: #{sgl_dense_forward.1} parent=19 // pred_fallthru
          _
      $region20: #{sgl_dense_forward.1} parent=5 // pred_fallthru
        _
      %p198 = scmp.le.s32.totalorder 1, %s20
      %p199 = scmp.lt.s32.totalorder %s20, 3
      %p200 = pnand %p198, %p199
      %p201 = pneg %p200
      // Predicated region
      $region29: #{sgl_dense_forward.1} parent=5 // pred_check
        _
      $region30: #{sgl_dense_forward.1} parent=5 // pred_check_branch
        %203 = sbr.rel (%p200) target = $region32
      $region31: #{sgl_dense_forward.1} parent=5 // pred_region
        %s204 = ssub.s32 %s20, 1
        %s205 = sand.u32 %s80, 1
        %s206 = scalar_lea.sflag [#allocation3], %s205
        %s207 = sand.u32 %s80, 1
        %s208 = smul.addr %s207, 512
        %s209 = scalar_lea.vmem [#allocation2], %s208
        // Predicated region
        $region33: #{sgl_dense_forward.1} parent=31 // pred_check
          %p210 = pneg %p93
        $region34: #{sgl_dense_forward.1} parent=31 // pred_check_branch
          %212 = sbr.rel (%p210) target = $region36
        $region35: #{sgl_dense_forward.1} parent=31 // pred_region
          %213 = dma.done %s206, 8192
        $region36: #{sgl_dense_forward.1} parent=31 // pred_fallthru
          _
        %p214 = pneg %p41
        %p215 = pneg %p38
        %s216 = smul.u32 2, %s25
        %p217 = scmp.lt.s32.totalorder %s216, 3
        %s218 = scalar_select %p217, %s216, 3
        %s219 = smul.addr %s218, 8
        %s220 = scalar_lea.vmem %s1, %s219
        %p221 = pneg %p67
        %p222 = pneg %p64
        %s223 = sand.u32 %s80, 1
        %s224 = scalar_lea.sflag [#allocation3], %s223
        %s225 = sand.u32 %s80, 1
        %s226 = smul.addr %s225, 512
        %s227 = scalar_lea.vmem [#allocation2], %s226
        %p228 = pneg %p93
        %p229 = pneg %p90
        %p230 = pneg %p119
        %p231 = pneg %p116
        %s232 = sand.u32 %s106, 1
        %s233 = scalar_lea.sflag [#allocation4], %s232
        %s234 = sand.u32 %s106, 1
        %s235 = smul.addr %s234, 16
        %s236 = scalar_lea.vmem [#allocation5], %s235
        %p237 = pneg %p145
        %p238 = pneg %p142
        %s239 = sand.u32 %s132, 1
        %s240 = scalar_lea.sflag [#allocation7], %s239
        %s241 = sand.u32 %s132, 1
        %s242 = smul.addr %s241, 512
        %s243 = scalar_lea.vmem [#allocation6], %s242
        %s244 = smul.u32 2, %s25
        %p245 = scmp.lt.s32.totalorder %s244, 3
        %s246 = scalar_select %p245, %s244, 3
        %s247 = smul.addr %s246, 8
        %s248 = scalar_lea.vmem %s1, %s247
        %s249 = smul.u32 2, %s25
        %s250 = smul.u32 32, %s25
        %s251 = smul.u32 2, %s25
        %s252 = smul.u32 32, %s25
        %v253 = vld [vmem:[%s0] sm:$0xff]
        %v254 = vld [vmem:[%s0 + $0x8] sm:$0xff]
        %v255 = vld [vmem:[%s248] sm:$0xff]
        %v256 = vld [vmem:[%s248 + $0x8] sm:$0xff]
        %v257 = vld [vmem:[%s209] sm:$0xff]
        %v258 = vld [vmem:[%s209 + $0x8] sm:$0xff]
        %v259 = vld [vmem:[%s209 + $0x10] sm:$0xff]
        %v260 = vld [vmem:[%s209 + $0x18] sm:$0xff]
        %v261 = vld [vmem:[%s209 + $0x20] sm:$0xff]
        %v262 = vld [vmem:[%s209 + $0x28] sm:$0xff]
        %v263 = vld [vmem:[%s209 + $0x30] sm:$0xff]
        %v264 = vld [vmem:[%s209 + $0x38] sm:$0xff]
        %v265 = vld [vmem:[%s209 + $0x40] sm:$0xff]
        %v266 = vld [vmem:[%s209 + $0x48] sm:$0xff]
        %v267 = vld [vmem:[%s209 + $0x50] sm:$0xff]
        %v268 = vld [vmem:[%s209 + $0x58] sm:$0xff]
        %v269 = vld [vmem:[%s209 + $0x60] sm:$0xff]
        %v270 = vld [vmem:[%s209 + $0x68] sm:$0xff]
        %v271 = vld [vmem:[%s209 + $0x70] sm:$0xff]
        %v272 = vld [vmem:[%s209 + $0x78] sm:$0xff]
        %v273 = vld [vmem:[%s209 + $0x80] sm:$0xff]
        %v274 = vld [vmem:[%s209 + $0x88] sm:$0xff]
        %v275 = vld [vmem:[%s209 + $0x90] sm:$0xff]
        %v276 = vld [vmem:[%s209 + $0x98] sm:$0xff]
        %v277 = vld [vmem:[%s209 + $0xa0] sm:$0xff]
        %v278 = vld [vmem:[%s209 + $0xa8] sm:$0xff]
        %v279 = vld [vmem:[%s209 + $0xb0] sm:$0xff]
        %v280 = vld [vmem:[%s209 + $0xb8] sm:$0xff]
        %v281 = vld [vmem:[%s209 + $0xc0] sm:$0xff]
        %v282 = vld [vmem:[%s209 + $0xc8] sm:$0xff]
        %v283 = vld [vmem:[%s209 + $0xd0] sm:$0xff]
        %v284 = vld [vmem:[%s209 + $0xd8] sm:$0xff]
        %v285 = vld [vmem:[%s209 + $0xe0] sm:$0xff]
        %v286 = vld [vmem:[%s209 + $0xe8] sm:$0xff]
        %v287 = vld [vmem:[%s209 + $0xf0] sm:$0xff]
        %v288 = vld [vmem:[%s209 + $0xf8] sm:$0xff]
        %v289 = vld [vmem:[%s209 + $0x100] sm:$0xff]
        %v290 = vld [vmem:[%s209 + $0x108] sm:$0xff]
        %v291 = vld [vmem:[%s209 + $0x110] sm:$0xff]
        %v292 = vld [vmem:[%s209 + $0x118] sm:$0xff]
        %v293 = vld [vmem:[%s209 + $0x120] sm:$0xff]
        %v294 = vld [vmem:[%s209 + $0x128] sm:$0xff]
        %v295 = vld [vmem:[%s209 + $0x130] sm:$0xff]
        %v296 = vld [vmem:[%s209 + $0x138] sm:$0xff]
        %v297 = vld [vmem:[%s209 + $0x140] sm:$0xff]
        %v298 = vld [vmem:[%s209 + $0x148] sm:$0xff]
        %v299 = vld [vmem:[%s209 + $0x150] sm:$0xff]
        %v300 = vld [vmem:[%s209 + $0x158] sm:$0xff]
        %v301 = vld [vmem:[%s209 + $0x160] sm:$0xff]
        %v302 = vld [vmem:[%s209 + $0x168] sm:$0xff]
        %v303 = vld [vmem:[%s209 + $0x170] sm:$0xff]
        %v304 = vld [vmem:[%s209 + $0x178] sm:$0xff]
        %v305 = vld [vmem:[%s209 + $0x180] sm:$0xff]
        %v306 = vld [vmem:[%s209 + $0x188] sm:$0xff]
        %v307 = vld [vmem:[%s209 + $0x190] sm:$0xff]
        %v308 = vld [vmem:[%s209 + $0x198] sm:$0xff]
        %v309 = vld [vmem:[%s209 + $0x1a0] sm:$0xff]
        %v310 = vld [vmem:[%s209 + $0x1a8] sm:$0xff]
        %v311 = vld [vmem:[%s209 + $0x1b0] sm:$0xff]
        %v312 = vld [vmem:[%s209 + $0x1b8] sm:$0xff]
        %v313 = vld [vmem:[%s209 + $0x1c0] sm:$0xff]
        %v314 = vld [vmem:[%s209 + $0x1c8] sm:$0xff]
        %v315 = vld [vmem:[%s209 + $0x1d0] sm:$0xff]
        %v316 = vld [vmem:[%s209 + $0x1d8] sm:$0xff]
        %v317 = vld [vmem:[%s209 + $0x1e0] sm:$0xff]
        %v318 = vld [vmem:[%s209 + $0x1e8] sm:$0xff]
        %v319 = vld [vmem:[%s209 + $0x1f0] sm:$0xff]
        %v320 = vld [vmem:[%s209 + $0x1f8] sm:$0xff]
        %321 = vmatprep.subr.mxu0 %v258
        %322 = vmatpush1.xpose.msra.mxu0 %v257
        %323 = vmatprep.subr.mxu0 %v260
        %324 = vmatpush1.xpose.msra.mxu0 %v259
        %325 = vmatprep.subr.mxu0 %v262
        %326 = vmatpush1.xpose.msra.mxu0 %v261
        %327 = vmatprep.subr.mxu0 %v264
        %328 = vmatpush1.xpose.msra.mxu0 %v263
        %329 = vmatprep.subr.mxu0 %v266
        %330 = vmatpush1.xpose.msra.mxu0 %v265
        %331 = vmatprep.subr.mxu0 %v268
        %332 = vmatpush1.xpose.msra.mxu0 %v267
        %333 = vmatprep.subr.mxu0 %v270
        %334 = vmatpush1.xpose.msra.mxu0 %v269
        %335 = vmatprep.subr.mxu0 %v272
        %336 = vmatpush1.xpose.msra.mxu0 %v271
        %337 = vmatprep.subr.mxu0 %v274
        %338 = vmatpush1.xpose.msra.mxu0 %v273
        %339 = vmatprep.subr.mxu0 %v276
        %340 = vmatpush1.xpose.msra.mxu0 %v275
        %341 = vmatprep.subr.mxu0 %v278
        %342 = vmatpush1.xpose.msra.mxu0 %v277
        %343 = vmatprep.subr.mxu0 %v280
        %344 = vmatpush1.xpose.msra.mxu0 %v279
        %345 = vmatprep.subr.mxu0 %v282
        %346 = vmatpush1.xpose.msra.mxu0 %v281
        %347 = vmatprep.subr.mxu0 %v284
        %348 = vmatpush1.xpose.msra.mxu0 %v283
        %349 = vmatprep.subr.mxu0 %v286
        %350 = vmatpush1.xpose.msra.mxu0 %v285
        %351 = vmatprep.subr.mxu0 %v288
        %352 = vmatpush1.xpose.msra.mxu0 %v287
        %353 = vmatprep.subr.mxu0 %v290
        %354 = vmatpush1.xpose.msra.mxu0 %v289
        %355 = vmatprep.subr.mxu0 %v292
        %356 = vmatpush1.xpose.msra.mxu0 %v291
        %357 = vmatprep.subr.mxu0 %v294
        %358 = vmatpush1.xpose.msra.mxu0 %v293
        %359 = vmatprep.subr.mxu0 %v296
        %360 = vmatpush1.xpose.msra.mxu0 %v295
        %361 = vmatprep.subr.mxu0 %v298
        %362 = vmatpush1.xpose.msra.mxu0 %v297
        %363 = vmatprep.subr.mxu0 %v300
        %364 = vmatpush1.xpose.msra.mxu0 %v299
        %365 = vmatprep.subr.mxu0 %v302
        %366 = vmatpush1.xpose.msra.mxu0 %v301
        %367 = vmatprep.subr.mxu0 %v304
        %368 = vmatpush1.xpose.msra.mxu0 %v303
        %369 = vmatprep.subr.mxu0 %v306
        %370 = vmatpush1.xpose.msra.mxu0 %v305
        %371 = vmatprep.subr.mxu0 %v308
        %372 = vmatpush1.xpose.msra.mxu0 %v307
        %373 = vmatprep.subr.mxu0 %v310
        %374 = vmatpush1.xpose.msra.mxu0 %v309
        %375 = vmatprep.subr.mxu0 %v312
        %376 = vmatpush1.xpose.msra.mxu0 %v311
        %377 = vmatprep.subr.mxu0 %v314
        %378 = vmatpush1.xpose.msra.mxu0 %v313
        %379 = vmatprep.subr.mxu0 %v316
        %380 = vmatpush1.xpose.msra.mxu0 %v315
        %381 = vmatprep.subr.mxu0 %v318
        %382 = vmatpush1.xpose.msra.mxu0 %v317
        %383 = vmatprep.subr.mxu0 %v320
        %384 = vmatpush1.xpose.msra.mxu0 %v319
        %385 = vmatprep.mubr.f32.mxu0 %v254
        %386 = vmatmul.mubr.f32.gmra.mrb[0].mxu0 %v253
        %v387 = vpop.f32.mrb[0].mxu0
        %v388 = vadd.f32 0.0, %v387
        %v389 = vpop.f32.mrb[0].mxu0
        %v390 = vadd.f32 0.0, %v389
        %391 = vdwg.mxu0
        %392 = vst [vmem:[%s236] sm:$0xff] %v388
        %393 = vst [vmem:[%s236 + $0x8] sm:$0xff] %v390
        %v394 = vmul.f32 %v255, 0.00125
        %v395 = vmul.f32 %v256, 0.00125
        %396 = vxpose.xlu0.b32.start [1/16] %v394, 128
        %397 = vxpose.xlu0.b32.cont [2/16] 0.0, 128
        %398 = vxpose.xlu0.b32.cont [3/16] 0.0, 128
        %399 = vxpose.xlu0.b32.cont [4/16] 0.0, 128
        %400 = vxpose.xlu0.b32.cont [5/16] 0.0, 128
        %401 = vxpose.xlu0.b32.cont [6/16] 0.0, 128
        %402 = vxpose.xlu0.b32.cont [7/16] 0.0, 128
        %403 = vxpose.xlu0.b32.cont [8/16] 0.0, 128
        %404 = vxpose.xlu0.b32.cont [9/16] 0.0, 128
        %405 = vxpose.xlu0.b32.cont [10/16] 0.0, 128
        %406 = vxpose.xlu0.b32.cont [11/16] 0.0, 128
        %407 = vxpose.xlu0.b32.cont [12/16] 0.0, 128
        %408 = vxpose.xlu0.b32.cont [13/16] 0.0, 128
        %409 = vxpose.xlu0.b32.cont [14/16] 0.0, 128
        %410 = vxpose.xlu0.b32.cont [15/16] 0.0, 128
        %411 = vxpose.xlu0.b32.end [16/16] 0.0, 128
        %v412 = vpop.trf.xlu0
        %v413 = vpop.trf.xlu0
        %v414 = vpop.trf.xlu0
        %v415 = vpop.trf.xlu0
        %v416 = vpop.trf.xlu0
        %v417 = vpop.trf.xlu0
        %v418 = vpop.trf.xlu0
        %v419 = vpop.trf.xlu0
        %v420 = vpop.trf.xlu0
        %v421 = vpop.trf.xlu0
        %v422 = vpop.trf.xlu0
        %v423 = vpop.trf.xlu0
        %v424 = vpop.trf.xlu0
        %v425 = vpop.trf.xlu0
        %v426 = vpop.trf.xlu0
        %v427 = vpop.trf.xlu0
        %428 = vxpose.xlu0.b32.start [1/16] %v395, 128
        %429 = vxpose.xlu0.b32.cont [2/16] 0.0, 128
        %430 = vxpose.xlu0.b32.cont [3/16] 0.0, 128
        %431 = vxpose.xlu0.b32.cont [4/16] 0.0, 128
        %432 = vxpose.xlu0.b32.cont [5/16] 0.0, 128
        %433 = vxpose.xlu0.b32.cont [6/16] 0.0, 128
        %434 = vxpose.xlu0.b32.cont [7/16] 0.0, 128
        %435 = vxpose.xlu0.b32.cont [8/16] 0.0, 128
        %436 = vxpose.xlu0.b32.cont [9/16] 0.0, 128
        %437 = vxpose.xlu0.b32.cont [10/16] 0.0, 128
        %438 = vxpose.xlu0.b32.cont [11/16] 0.0, 128
        %439 = vxpose.xlu0.b32.cont [12/16] 0.0, 128
        %440 = vxpose.xlu0.b32.cont [13/16] 0.0, 128
        %441 = vxpose.xlu0.b32.cont [14/16] 0.0, 128
        %442 = vxpose.xlu0.b32.cont [15/16] 0.0, 128
        %443 = vxpose.xlu0.b32.end [16/16] 0.0, 128
        %v444 = vpop.trf.xlu0
        %v445 = vpop.trf.xlu0
        %v446 = vpop.trf.xlu0
        %v447 = vpop.trf.xlu0
        %v448 = vpop.trf.xlu0
        %v449 = vpop.trf.xlu0
        %v450 = vpop.trf.xlu0
        %v451 = vpop.trf.xlu0
        %v452 = vpop.trf.xlu0
        %v453 = vpop.trf.xlu0
        %v454 = vpop.trf.xlu0
        %v455 = vpop.trf.xlu0
        %v456 = vpop.trf.xlu0
        %v457 = vpop.trf.xlu0
        %v458 = vpop.trf.xlu0
        %v459 = vpop.trf.xlu0
        %vm460 = vcmask 64512
        %v462 = vsel %vm460, %v412, 0
        %v465 = vsel %vm460, %v413, 0
        %v468 = vsel %vm460, %v414, 0
        %v471 = vsel %vm460, %v415, 0
        %v474 = vsel %vm460, %v416, 0
        %v477 = vsel %vm460, %v417, 0
        %v480 = vsel %vm460, %v418, 0
        %v483 = vsel %vm460, %v419, 0
        %v486 = vsel %vm460, %v420, 0
        %v489 = vsel %vm460, %v421, 0
        %v492 = vsel %vm460, %v422, 0
        %v495 = vsel %vm460, %v423, 0
        %v498 = vsel %vm460, %v424, 0
        %v501 = vsel %vm460, %v425, 0
        %v504 = vsel %vm460, %v426, 0
        %v507 = vsel %vm460, %v427, 0
        %v510 = vsel %vm460, %v444, 0
        %v513 = vsel %vm460, %v445, 0
        %v516 = vsel %vm460, %v446, 0
        %v519 = vsel %vm460, %v447, 0
        %v522 = vsel %vm460, %v448, 0
        %v525 = vsel %vm460, %v449, 0
        %v528 = vsel %vm460, %v450, 0
        %v531 = vsel %vm460, %v451, 0
        %v534 = vsel %vm460, %v452, 0
        %v537 = vsel %vm460, %v453, 0
        %v540 = vsel %vm460, %v454, 0
        %v543 = vsel %vm460, %v455, 0
        %v546 = vsel %vm460, %v456, 0
        %v549 = vsel %vm460, %v457, 0
        %v552 = vsel %vm460, %v458, 0
        %v555 = vsel %vm460, %v459, 0
        %557 = vmatprep.subr.mxu0 %v254
        %558 = vmatpush1.msra.mxu0 %v253
        %559 = vmatprep.subr.mxu0 0.0
        %560 = vmatpush1.msra.mxu0 0.0
        %561 = vmatprep.subr.mxu0 0.0
        %562 = vmatpush1.msra.mxu0 0.0
        %563 = vmatprep.subr.mxu0 0.0
        %564 = vmatpush1.msra.mxu0 0.0
        %565 = vmatprep.subr.mxu0 0.0
        %566 = vmatpush1.msra.mxu0 0.0
        %567 = vmatprep.subr.mxu0 0.0
        %568 = vmatpush1.msra.mxu0 0.0
        %569 = vmatprep.subr.mxu0 0.0
        %570 = vmatpush1.msra.mxu0 0.0
        %571 = vmatprep.subr.mxu0 0.0
        %572 = vmatpush1.msra.mxu0 0.0
        %573 = vmatprep.subr.mxu0 0.0
        %574 = vmatpush1.msra.mxu0 0.0
        %575 = vmatprep.subr.mxu0 0.0
        %576 = vmatpush1.msra.mxu0 0.0
        %577 = vmatprep.subr.mxu0 0.0
        %578 = vmatpush1.msra.mxu0 0.0
        %579 = vmatprep.subr.mxu0 0.0
        %580 = vmatpush1.msra.mxu0 0.0
        %581 = vmatprep.subr.mxu0 0.0
        %582 = vmatpush1.msra.mxu0 0.0
        %583 = vmatprep.subr.mxu0 0.0
        %584 = vmatpush1.msra.mxu0 0.0
        %585 = vmatprep.subr.mxu0 0.0
        %586 = vmatpush1.msra.mxu0 0.0
        %587 = vmatprep.subr.mxu0 0.0
        %588 = vmatpush1.msra.mxu0 0.0
        %589 = vmatprep.subr.mxu0 0.0
        %590 = vmatpush1.msra.mxu0 0.0
        %591 = vmatprep.subr.mxu0 0.0
        %592 = vmatpush1.msra.mxu0 0.0
        %593 = vmatprep.subr.mxu0 0.0
        %594 = vmatpush1.msra.mxu0 0.0
        %595 = vmatprep.subr.mxu0 0.0
        %596 = vmatpush1.msra.mxu0 0.0
        %597 = vmatprep.subr.mxu0 0.0
        %598 = vmatpush1.msra.mxu0 0.0
        %599 = vmatprep.subr.mxu0 0.0
        %600 = vmatpush1.msra.mxu0 0.0
        %601 = vmatprep.subr.mxu0 0.0
        %602 = vmatpush1.msra.mxu0 0.0
        %603 = vmatprep.subr.mxu0 0.0
        %604 = vmatpush1.msra.mxu0 0.0
        %605 = vmatprep.subr.mxu0 0.0
        %606 = vmatpush1.msra.mxu0 0.0
        %607 = vmatprep.subr.mxu0 0.0
        %608 = vmatpush1.msra.mxu0 0.0
        %609 = vmatprep.subr.mxu0 0.0
        %610 = vmatpush1.msra.mxu0 0.0
        %611 = vmatprep.subr.mxu0 0.0
        %612 = vmatpush1.msra.mxu0 0.0
        %613 = vmatprep.subr.mxu0 0.0
        %614 = vmatpush1.msra.mxu0 0.0
        %615 = vmatprep.subr.mxu0 0.0
        %616 = vmatpush1.msra.mxu0 0.0
        %617 = vmatprep.subr.mxu0 0.0
        %618 = vmatpush1.msra.mxu0 0.0
        %619 = vmatprep.subr.mxu0 0.0
        %620 = vmatpush1.msra.mxu0 0.0
        %621 = vmatprep.mubr.f32.mxu0 0.0
        %622 = vmatmul.mubr.f32.gmra.mrb[0].mxu0 %v462
        %v623 = vpop.f32.mrb[0].mxu0
        %v624 = vadd.f32 0.0, %v623
        %v625 = vpop.f32.mrb[0].mxu0
        %v626 = vadd.f32 0.0, %v625
        %627 = vmatprep.mubr.f32.mxu0 0.0
        %628 = vmatmul.mubr.f32.gmra.mrb[0].mxu0 %v465
        %v629 = vpop.f32.mrb[0].mxu0
        %v630 = vadd.f32 0.0, %v629
        %v631 = vpop.f32.mrb[0].mxu0
        %v632 = vadd.f32 0.0, %v631
        %633 = vmatprep.mubr.f32.mxu0 0.0
        %634 = vmatmul.mubr.f32.gmra.mrb[0].mxu0 %v468
        %v635 = vpop.f32.mrb[0].mxu0
        %v636 = vadd.f32 0.0, %v635
        %v637 = vpop.f32.mrb[0].mxu0
        %v638 = vadd.f32 0.0, %v637
        %639 = vmatprep.mubr.f32.mxu0 0.0
        %640 = vmatmul.mubr.f32.gmra.mrb[0].mxu0 %v471
        %v641 = vpop.f32.mrb[0].mxu0
        %v642 = vadd.f32 0.0, %v641
        %v643 = vpop.f32.mrb[0].mxu0
        %v644 = vadd.f32 0.0, %v643
        %645 = vmatprep.mubr.f32.mxu0 0.0
        %646 = vmatmul.mubr.f32.gmra.mrb[0].mxu0 %v474
        %v647 = vpop.f32.mrb[0].mxu0
        %v648 = vadd.f32 0.0, %v647
        %v649 = vpop.f32.mrb[0].mxu0
        %v650 = vadd.f32 0.0, %v649
        %651 = vmatprep.mubr.f32.mxu0 0.0
        %652 = vmatmul.mubr.f32.gmra.mrb[0].mxu0 %v477
        %v653 = vpop.f32.mrb[0].mxu0
        %v654 = vadd.f32 0.0, %v653
        %v655 = vpop.f32.mrb[0].mxu0
        %v656 = vadd.f32 0.0, %v655
        %657 = vmatprep.mubr.f32.mxu0 0.0
        %658 = vmatmul.mubr.f32.gmra.mrb[0].mxu0 %v480
        %v659 = vpop.f32.mrb[0].mxu0
        %v660 = vadd.f32 0.0, %v659
        %v661 = vpop.f32.mrb[0].mxu0
        %v662 = vadd.f32 0.0, %v661
        %663 = vmatprep.mubr.f32.mxu0 0.0
        %664 = vmatmul.mubr.f32.gmra.mrb[0].mxu0 %v483
        %v665 = vpop.f32.mrb[0].mxu0
        %v666 = vadd.f32 0.0, %v665
        %v667 = vpop.f32.mrb[0].mxu0
        %v668 = vadd.f32 0.0, %v667
        %669 = vmatprep.mubr.f32.mxu0 0.0
        %670 = vmatmul.mubr.f32.gmra.mrb[0].mxu0 %v486
        %v671 = vpop.f32.mrb[0].mxu0
        %v672 = vadd.f32 0.0, %v671
        %v673 = vpop.f32.mrb[0].mxu0
        %v674 = vadd.f32 0.0, %v673
        %675 = vmatprep.mubr.f32.mxu0 0.0
        %676 = vmatmul.mubr.f32.gmra.mrb[0].mxu0 %v489
        %v677 = vpop.f32.mrb[0].mxu0
        %v678 = vadd.f32 0.0, %v677
        %v679 = vpop.f32.mrb[0].mxu0
        %v680 = vadd.f32 0.0, %v679
        %681 = vmatprep.mubr.f32.mxu0 0.0
        %682 = vmatmul.mubr.f32.gmra.mrb[0].mxu0 %v492
        %v683 = vpop.f32.mrb[0].mxu0
        %v684 = vadd.f32 0.0, %v683
        %v685 = vpop.f32.mrb[0].mxu0
        %v686 = vadd.f32 0.0, %v685
        %687 = vmatprep.mubr.f32.mxu0 0.0
        %688 = vmatmul.mubr.f32.gmra.mrb[0].mxu0 %v495
        %v689 = vpop.f32.mrb[0].mxu0
        %v690 = vadd.f32 0.0, %v689
        %v691 = vpop.f32.mrb[0].mxu0
        %v692 = vadd.f32 0.0, %v691
        %693 = vmatprep.mubr.f32.mxu0 0.0
        %694 = vmatmul.mubr.f32.gmra.mrb[0].mxu0 %v498
        %v695 = vpop.f32.mrb[0].mxu0
        %v696 = vadd.f32 0.0, %v695
        %v697 = vpop.f32.mrb[0].mxu0
        %v698 = vadd.f32 0.0, %v697
        %699 = vmatprep.mubr.f32.mxu0 0.0
        %700 = vmatmul.mubr.f32.gmra.mrb[0].mxu0 %v501
        %v701 = vpop.f32.mrb[0].mxu0
        %v702 = vadd.f32 0.0, %v701
        %v703 = vpop.f32.mrb[0].mxu0
        %v704 = vadd.f32 0.0, %v703
        %705 = vmatprep.mubr.f32.mxu0 0.0
        %706 = vmatmul.mubr.f32.gmra.mrb[0].mxu0 %v504
        %v707 = vpop.f32.mrb[0].mxu0
        %v708 = vadd.f32 0.0, %v707
        %v709 = vpop.f32.mrb[0].mxu0
        %v710 = vadd.f32 0.0, %v709
        %711 = vmatprep.mubr.f32.mxu0 0.0
        %712 = vmatmul.mubr.f32.gmra.mrb[0].mxu0 %v507
        %v713 = vpop.f32.mrb[0].mxu0
        %v714 = vadd.f32 0.0, %v713
        %v715 = vpop.f32.mrb[0].mxu0
        %v716 = vadd.f32 0.0, %v715
        %717 = vmatprep.mubr.f32.mxu0 0.0
        %718 = vmatmul.mubr.f32.gmra.mrb[0].mxu0 %v510
        %v719 = vpop.f32.mrb[0].mxu0
        %v720 = vadd.f32 0.0, %v719
        %v721 = vpop.f32.mrb[0].mxu0
        %v722 = vadd.f32 0.0, %v721
        %723 = vmatprep.mubr.f32.mxu0 0.0
        %724 = vmatmul.mubr.f32.gmra.mrb[0].mxu0 %v513
        %v725 = vpop.f32.mrb[0].mxu0
        %v726 = vadd.f32 0.0, %v725
        %v727 = vpop.f32.mrb[0].mxu0
        %v728 = vadd.f32 0.0, %v727
        %729 = vmatprep.mubr.f32.mxu0 0.0
        %730 = vmatmul.mubr.f32.gmra.mrb[0].mxu0 %v516
        %v731 = vpop.f32.mrb[0].mxu0
        %v732 = vadd.f32 0.0, %v731
        %v733 = vpop.f32.mrb[0].mxu0
        %v734 = vadd.f32 0.0, %v733
        %735 = vmatprep.mubr.f32.mxu0 0.0
        %736 = vmatmul.mubr.f32.gmra.mrb[0].mxu0 %v519
        %v737 = vpop.f32.mrb[0].mxu0
        %v738 = vadd.f32 0.0, %v737
        %v739 = vpop.f32.mrb[0].mxu0
        %v740 = vadd.f32 0.0, %v739
        %741 = vmatprep.mubr.f32.mxu0 0.0
        %742 = vmatmul.mubr.f32.gmra.mrb[0].mxu0 %v522
        %v743 = vpop.f32.mrb[0].mxu0
        %v744 = vadd.f32 0.0, %v743
        %v745 = vpop.f32.mrb[0].mxu0
        %v746 = vadd.f32 0.0, %v745
        %747 = vmatprep.mubr.f32.mxu0 0.0
        %748 = vmatmul.mubr.f32.gmra.mrb[0].mxu0 %v525
        %v749 = vpop.f32.mrb[0].mxu0
        %v750 = vadd.f32 0.0, %v749
        %v751 = vpop.f32.mrb[0].mxu0
        %v752 = vadd.f32 0.0, %v751
        %753 = vmatprep.mubr.f32.mxu0 0.0
        %754 = vmatmul.mubr.f32.gmra.mrb[0].mxu0 %v528
        %v755 = vpop.f32.mrb[0].mxu0
        %v756 = vadd.f32 0.0, %v755
        %v757 = vpop.f32.mrb[0].mxu0
        %v758 = vadd.f32 0.0, %v757
        %759 = vmatprep.mubr.f32.mxu0 0.0
        %760 = vmatmul.mubr.f32.gmra.mrb[0].mxu0 %v531
        %v761 = vpop.f32.mrb[0].mxu0
        %v762 = vadd.f32 0.0, %v761
        %v763 = vpop.f32.mrb[0].mxu0
        %v764 = vadd.f32 0.0, %v763
        %765 = vmatprep.mubr.f32.mxu0 0.0
        %766 = vmatmul.mubr.f32.gmra.mrb[0].mxu0 %v534
        %v767 = vpop.f32.mrb[0].mxu0
        %v768 = vadd.f32 0.0, %v767
        %v769 = vpop.f32.mrb[0].mxu0
        %v770 = vadd.f32 0.0, %v769
        %771 = vmatprep.mubr.f32.mxu0 0.0
        %772 = vmatmul.mubr.f32.gmra.mrb[0].mxu0 %v537
        %v773 = vpop.f32.mrb[0].mxu0
        %v774 = vadd.f32 0.0, %v773
        %v775 = vpop.f32.mrb[0].mxu0
        %v776 = vadd.f32 0.0, %v775
        %777 = vmatprep.mubr.f32.mxu0 0.0
        %778 = vmatmul.mubr.f32.gmra.mrb[0].mxu0 %v540
        %v779 = vpop.f32.mrb[0].mxu0
        %v780 = vadd.f32 0.0, %v779
        %v781 = vpop.f32.mrb[0].mxu0
        %v782 = vadd.f32 0.0, %v781
        %783 = vmatprep.mubr.f32.mxu0 0.0
        %784 = vmatmul.mubr.f32.gmra.mrb[0].mxu0 %v543
        %v785 = vpop.f32.mrb[0].mxu0
        %v786 = vadd.f32 0.0, %v785
        %v787 = vpop.f32.mrb[0].mxu0
        %v788 = vadd.f32 0.0, %v787
        %789 = vmatprep.mubr.f32.mxu0 0.0
        %790 = vmatmul.mubr.f32.gmra.mrb[0].mxu0 %v546
        %v791 = vpop.f32.mrb[0].mxu0
        %v792 = vadd.f32 0.0, %v791
        %v793 = vpop.f32.mrb[0].mxu0
        %v794 = vadd.f32 0.0, %v793
        %795 = vmatprep.mubr.f32.mxu0 0.0
        %796 = vmatmul.mubr.f32.gmra.mrb[0].mxu0 %v549
        %v797 = vpop.f32.mrb[0].mxu0
        %v798 = vadd.f32 0.0, %v797
        %v799 = vpop.f32.mrb[0].mxu0
        %v800 = vadd.f32 0.0, %v799
        %801 = vmatprep.mubr.f32.mxu0 0.0
        %802 = vmatmul.mubr.f32.gmra.mrb[0].mxu0 %v552
        %v803 = vpop.f32.mrb[0].mxu0
        %v804 = vadd.f32 0.0, %v803
        %v805 = vpop.f32.mrb[0].mxu0
        %v806 = vadd.f32 0.0, %v805
        %807 = vmatprep.mubr.f32.mxu0 0.0
        %808 = vmatmul.mubr.f32.gmra.mrb[0].mxu0 %v555
        %v809 = vpop.f32.mrb[0].mxu0
        %v810 = vadd.f32 0.0, %v809
        %v811 = vpop.f32.mrb[0].mxu0
        %v812 = vadd.f32 0.0, %v811
        %813 = vdwg.mxu0
        %v814 = vadd.f32 %v257, %v624
        %v815 = vadd.f32 %v258, %v626
        %v816 = vadd.f32 %v259, %v630
        %v817 = vadd.f32 %v260, %v632
        %v818 = vadd.f32 %v261, %v636
        %v819 = vadd.f32 %v262, %v638
        %v820 = vadd.f32 %v263, %v642
        %v821 = vadd.f32 %v264, %v644
        %v822 = vadd.f32 %v265, %v648
        %v823 = vadd.f32 %v266, %v650
        %v824 = vadd.f32 %v267, %v654
        %v825 = vadd.f32 %v268, %v656
        %v826 = vadd.f32 %v269, %v660
        %v827 = vadd.f32 %v270, %v662
        %v828 = vadd.f32 %v271, %v666
        %v829 = vadd.f32 %v272, %v668
        %v830 = vadd.f32 %v273, %v672
        %v831 = vadd.f32 %v274, %v674
        %v832 = vadd.f32 %v275, %v678
        %v833 = vadd.f32 %v276, %v680
        %v834 = vadd.f32 %v277, %v684
        %v835 = vadd.f32 %v278, %v686
        %v836 = vadd.f32 %v279, %v690
        %v837 = vadd.f32 %v280, %v692
        %v838 = vadd.f32 %v281, %v696
        %v839 = vadd.f32 %v282, %v698
        %v840 = vadd.f32 %v283, %v702
        %v841 = vadd.f32 %v284, %v704
        %v842 = vadd.f32 %v285, %v708
        %v843 = vadd.f32 %v286, %v710
        %v844 = vadd.f32 %v287, %v714
        %v845 = vadd.f32 %v288, %v716
        %v846 = vadd.f32 %v289, %v720
        %v847 = vadd.f32 %v290, %v722
        %v848 = vadd.f32 %v291, %v726
        %v849 = vadd.f32 %v292, %v728
        %v850 = vadd.f32 %v293, %v732
        %v851 = vadd.f32 %v294, %v734
        %v852 = vadd.f32 %v295, %v738
        %v853 = vadd.f32 %v296, %v740
        %v854 = vadd.f32 %v297, %v744
        %v855 = vadd.f32 %v298, %v746
        %v856 = vadd.f32 %v299, %v750
        %v857 = vadd.f32 %v300, %v752
        %v858 = vadd.f32 %v301, %v756
        %v859 = vadd.f32 %v302, %v758
        %v860 = vadd.f32 %v303, %v762
        %v861 = vadd.f32 %v304, %v764
        %v862 = vadd.f32 %v305, %v768
        %v863 = vadd.f32 %v306, %v770
        %v864 = vadd.f32 %v307, %v774
        %v865 = vadd.f32 %v308, %v776
        %v866 = vadd.f32 %v309, %v780
        %v867 = vadd.f32 %v310, %v782
        %v868 = vadd.f32 %v311, %v786
        %v869 = vadd.f32 %v312, %v788
        %v870 = vadd.f32 %v313, %v792
        %v871 = vadd.f32 %v314, %v794
        %v872 = vadd.f32 %v315, %v798
        %v873 = vadd.f32 %v316, %v800
        %v874 = vadd.f32 %v317, %v804
        %v875 = vadd.f32 %v318, %v806
        %v876 = vadd.f32 %v319, %v810
        %v877 = vadd.f32 %v320, %v812
        %878 = vst [vmem:[%s243] sm:$0xff] %v814
        %879 = vst [vmem:[%s243 + $0x8] sm:$0xff] %v815
        %880 = vst [vmem:[%s243 + $0x10] sm:$0xff] %v816
        %881 = vst [vmem:[%s243 + $0x18] sm:$0xff] %v817
        %882 = vst [vmem:[%s243 + $0x20] sm:$0xff] %v818
        %883 = vst [vmem:[%s243 + $0x28] sm:$0xff] %v819
        %884 = vst [vmem:[%s243 + $0x30] sm:$0xff] %v820
        %885 = vst [vmem:[%s243 + $0x38] sm:$0xff] %v821
        %886 = vst [vmem:[%s243 + $0x40] sm:$0xff] %v822
        %887 = vst [vmem:[%s243 + $0x48] sm:$0xff] %v823
        %888 = vst [vmem:[%s243 + $0x50] sm:$0xff] %v824
        %889 = vst [vmem:[%s243 + $0x58] sm:$0xff] %v825
        %890 = vst [vmem:[%s243 + $0x60] sm:$0xff] %v826
        %891 = vst [vmem:[%s243 + $0x68] sm:$0xff] %v827
        %892 = vst [vmem:[%s243 + $0x70] sm:$0xff] %v828
        %893 = vst [vmem:[%s243 + $0x78] sm:$0xff] %v829
        %894 = vst [vmem:[%s243 + $0x80] sm:$0xff] %v830
        %895 = vst [vmem:[%s243 + $0x88] sm:$0xff] %v831
        %896 = vst [vmem:[%s243 + $0x90] sm:$0xff] %v832
        %897 = vst [vmem:[%s243 + $0x98] sm:$0xff] %v833
        %898 = vst [vmem:[%s243 + $0xa0] sm:$0xff] %v834
        %899 = vst [vmem:[%s243 + $0xa8] sm:$0xff] %v835
        %900 = vst [vmem:[%s243 + $0xb0] sm:$0xff] %v836
        %901 = vst [vmem:[%s243 + $0xb8] sm:$0xff] %v837
        %902 = vst [vmem:[%s243 + $0xc0] sm:$0xff] %v838
        %903 = vst [vmem:[%s243 + $0xc8] sm:$0xff] %v839
        %904 = vst [vmem:[%s243 + $0xd0] sm:$0xff] %v840
        %905 = vst [vmem:[%s243 + $0xd8] sm:$0xff] %v841
        %906 = vst [vmem:[%s243 + $0xe0] sm:$0xff] %v842
        %907 = vst [vmem:[%s243 + $0xe8] sm:$0xff] %v843
        %908 = vst [vmem:[%s243 + $0xf0] sm:$0xff] %v844
        %909 = vst [vmem:[%s243 + $0xf8] sm:$0xff] %v845
        %910 = vst [vmem:[%s243 + $0x100] sm:$0xff] %v846
        %911 = vst [vmem:[%s243 + $0x108] sm:$0xff] %v847
        %912 = vst [vmem:[%s243 + $0x110] sm:$0xff] %v848
        %913 = vst [vmem:[%s243 + $0x118] sm:$0xff] %v849
        %914 = vst [vmem:[%s243 + $0x120] sm:$0xff] %v850
        %915 = vst [vmem:[%s243 + $0x128] sm:$0xff] %v851
        %916 = vst [vmem:[%s243 + $0x130] sm:$0xff] %v852
        %917 = vst [vmem:[%s243 + $0x138] sm:$0xff] %v853
        %918 = vst [vmem:[%s243 + $0x140] sm:$0xff] %v854
        %919 = vst [vmem:[%s243 + $0x148] sm:$0xff] %v855
        %920 = vst [vmem:[%s243 + $0x150] sm:$0xff] %v856
        %921 = vst [vmem:[%s243 + $0x158] sm:$0xff] %v857
        %922 = vst [vmem:[%s243 + $0x160] sm:$0xff] %v858
        %923 = vst [vmem:[%s243 + $0x168] sm:$0xff] %v859
        %924 = vst [vmem:[%s243 + $0x170] sm:$0xff] %v860
        %925 = vst [vmem:[%s243 + $0x178] sm:$0xff] %v861
        %926 = vst [vmem:[%s243 + $0x180] sm:$0xff] %v862
        %927 = vst [vmem:[%s243 + $0x188] sm:$0xff] %v863
        %928 = vst [vmem:[%s243 + $0x190] sm:$0xff] %v864
        %929 = vst [vmem:[%s243 + $0x198] sm:$0xff] %v865
        %930 = vst [vmem:[%s243 + $0x1a0] sm:$0xff] %v866
        %931 = vst [vmem:[%s243 + $0x1a8] sm:$0xff] %v867
        %932 = vst [vmem:[%s243 + $0x1b0] sm:$0xff] %v868
        %933 = vst [vmem:[%s243 + $0x1b8] sm:$0xff] %v869
        %934 = vst [vmem:[%s243 + $0x1c0] sm:$0xff] %v870
        %935 = vst [vmem:[%s243 + $0x1c8] sm:$0xff] %v871
        %936 = vst [vmem:[%s243 + $0x1d0] sm:$0xff] %v872
        %937 = vst [vmem:[%s243 + $0x1d8] sm:$0xff] %v873
        %938 = vst [vmem:[%s243 + $0x1e0] sm:$0xff] %v874
        %939 = vst [vmem:[%s243 + $0x1e8] sm:$0xff] %v875
        %940 = vst [vmem:[%s243 + $0x1f0] sm:$0xff] %v876
        %941 = vst [vmem:[%s243 + $0x1f8] sm:$0xff] %v877
        %s942 = sand.u32 %s106, 1
        %s943 = scalar_lea.sflag [#allocation4], %s942
        %s944 = sand.u32 %s106, 1
        %s945 = smul.addr %s944, 16
        %s946 = scalar_lea.vmem [#allocation5], %s945
        %s947 = sand.u32 %s132, 1
        %s948 = scalar_lea.sflag [#allocation7], %s947
        %s949 = sand.u32 %s132, 1
        %s950 = smul.addr %s949, 512
        %s951 = scalar_lea.vmem [#allocation6], %s950
        // Predicated region
        $region37: #{sgl_dense_forward.1} parent=31 // pred_check
          %p952 = pneg %p116
        $region38: #{sgl_dense_forward.1} parent=31 // pred_check_branch
          %954 = sbr.rel (%p952) target = $region40
        $region39: #{sgl_dense_forward.1} parent=31 // pred_region
          %s955 = smul.u32 2, %s25
          %s957 = ssub.s32 256, 256
          %958 = vsyncadd %s943, %s957
          %s959 = smul.addr %s955, 128
          %s960 = scalar_lea.hbm %s3, %s959
          %s962 = sshll.u32 %s946, 4
          %s963 = int_to_ptr.vmem [resolvable:$true] %s962
          %965 = dma.vmem_to_hbm [thread:$0]  %s963, 256, %s960, %s943
        $region40: #{sgl_dense_forward.1} parent=31 // pred_fallthru
          _
        // Predicated region
        $region41: #{sgl_dense_forward.1} parent=31 // pred_check
          %p966 = pneg %p142
        $region42: #{sgl_dense_forward.1} parent=31 // pred_check_branch
          %968 = sbr.rel (%p966) target = $region44
        $region43: #{sgl_dense_forward.1} parent=31 // pred_region
          %s969 = smul.u32 32, %s25
          %s971 = ssub.s32 8192, 8192
          %972 = vsyncadd %s948, %s971
          %s973 = smul.addr %s969, 2
          %s974 = smul.addr %s973, 128
          %s975 = scalar_lea.hbm %s4, %s974
          %s976 = sshll.u32 %s951, 4
          %s977 = int_to_ptr.vmem [resolvable:$true] %s976
          %982 = dma.vmem_to_hbm [thread:$0]  %s977, 8192, %s975, %s948, 256, 256, 16
        $region44: #{sgl_dense_forward.1} parent=31 // pred_fallthru
          _
      $region32: #{sgl_dense_forward.1} parent=5 // pred_fallthru
        _
      %p983 = scmp.le.s32.totalorder 2, %s20
      // Predicated region
      $region45: #{sgl_dense_forward.1} parent=5 // pred_check
        %p984 = pneg %p983
      $region46: #{sgl_dense_forward.1} parent=5 // pred_check_branch
        %986 = sbr.rel (%p984) target = $region48
      $region47: #{sgl_dense_forward.1} parent=5 // pred_region
        %s987 = ssub.s32 %s20, 2
        // Predicated region
        $region49: #{sgl_dense_forward.1} parent=47 // pred_check
          %p988 = pneg %p122
        $region50: #{sgl_dense_forward.1} parent=47 // pred_check_branch
          %990 = sbr.rel (%p988) target = $region52
        $region51: #{sgl_dense_forward.1} parent=47 // pred_region
          %s991 = sand.u32 %s107, 1
          %s992 = scalar_lea.sflag [#allocation4], %s991
          %s993 = sand.u32 %s107, 1
          %s994 = smul.addr %s993, 16
          %s995 = scalar_lea.vmem [#allocation5], %s994
          %996 = dma.done %s992, 256
        $region52: #{sgl_dense_forward.1} parent=47 // pred_fallthru
          _
        // Predicated region
        $region53: #{sgl_dense_forward.1} parent=47 // pred_check
          %p997 = pneg %p148
        $region54: #{sgl_dense_forward.1} parent=47 // pred_check_branch
          %999 = sbr.rel (%p997) target = $region56
        $region55: #{sgl_dense_forward.1} parent=47 // pred_region
          %s1000 = sand.u32 %s133, 1
          %s1001 = scalar_lea.sflag [#allocation7], %s1000
          %s1002 = sand.u32 %s133, 1
          %s1003 = smul.addr %s1002, 512
          %s1004 = scalar_lea.vmem [#allocation6], %s1003
          %1005 = dma.done %s1001, 8192
        $region56: #{sgl_dense_forward.1} parent=47 // pred_fallthru
          _
      $region48: #{sgl_dense_forward.1} parent=5 // pred_fallthru
        _
    $region6: #{sgl_dense_forward.1} parent=1 // loop_footer
      %s24 = sadd.s32 1, %s20
    $region7: #{sgl_dense_forward.1} parent=1 // loop_footer_branch
      %19 = sbr.rel target = $region3
    $region8: #{sgl_dense_forward.1} parent=1 // loop_exit
      _
    %1006 = vsyncpa [#allocation3], 1
    %s1007 = scalar_lea.sflag [#allocation3], 1
    %1008 = vsyncpa %s1007, 1
    %1009 = vsyncpa [#allocation4], 1
    %s1010 = scalar_lea.sflag [#allocation4], 1
    %1011 = vsyncpa %s1010, 1
    %1012 = vsyncpa [#allocation7], 1
    %s1013 = scalar_lea.sflag [#allocation7], 1
    %1014 = vsyncpa %s1013, 1

</llo_original>
